<compile_context>
chip_gen: v5e
topology: v5e:2x2
jax: 0.10.0
libtpu: 0.0.40
codegen_flags: <defaults>
</compile_context>

<pallas_src>
import jax
import jax.numpy as jnp
from jax.experimental import pallas as pl
from jax.experimental.pallas import tpu as pltpu


def _round_up(x, m):
    return ((x + m - 1) // m) * m


def _tpu_generation():
    """Best-effort TPU generation (4/5/6/7); 0 if unknown."""
    try:
        kind = jax.devices()[0].device_kind.lower()
    except Exception:
        return 0
    for g in (7, 6, 5, 4):
        if f"v{g}" in kind:
            return g
    return 0


def _pick_tiles(B, S, C_in, C_out, dtype):
    """Pick (b_blk, tn, vmem_limit_bytes) for the 2-D grid (batch, spatial)."""
    itemsize = jnp.dtype(dtype).itemsize
    sublane = 16 if itemsize == 2 else 8            # packed dtypes pad to 16 sublanes
    cin_p = _round_up(C_in, sublane)
    cout_p = _round_up(C_out, sublane)
    # bytes of (x-tile + out-tile) per lane column, per batch row, incl. padding
    per_col = (cin_p + cout_p) * itemsize

    gen = _tpu_generation()
    if gen >= 7:
        # v7x: 64 MiB physical VMEM/TC, ~3.2 TB/s HBM -> per-step overhead
        # hurts most here; big tiles, but leave compiler headroom.
        step_target = 4 << 20
        db_budget = 20 << 20                        # double-buffered x+out footprint
        vmem_limit = 48 << 20
    elif gen == 6:
        # v6e: 128 MiB physical VMEM, ~1.4 TB/s HBM -> lots of headroom.
        step_target = 4 << 20
        db_budget = 32 << 20
        vmem_limit = 80 << 20
    elif gen in (4, 5):
        # v5e: scoped default is only 16 MiB; raise it modestly.
        step_target = 2 << 20
        db_budget = 12 << 20
        vmem_limit = 28 << 20
    else:
        # Unknown part: stay under every default scoped-VMEM limit.
        step_target = 2 << 20
        db_budget = 12 << 20
        vmem_limit = None

    # ---- batch blocking: only pays off when the spatial axis is small ----
    full_s_bytes = per_col * _round_up(S, 128)
    b_blk = 1
    if B > 1 and full_s_bytes < step_target:
        b_blk = min(
            B,
            16,                                              # compile-time sanity
            max(1, step_target // max(full_s_bytes, 1)),     # amortize per-step cost
            max(1, db_budget // (2 * full_s_bytes)),         # stay inside VMEM budget
        )
        while B % b_blk:                                     # keep batch blocks dense
            b_blk -= 1

    # ---- spatial lane tile ----
    if S <= 512:
        tn = S                                   # full-extent block (always legal)
    else:
        tn_budget = db_budget // (2 * per_col * b_blk)
        if tn_budget >= S:
            tn = S
        else:
            tn = max(256, (tn_budget // 256) * 256)

    # ---- v7x: make sure both TensorCores have enough grid steps ----
    if gen >= 7:
        def n_steps(bb, t):
            return pl.cdiv(B, bb) * pl.cdiv(S, t)

        while n_steps(b_blk, tn) < 6 and tn >= 512:
            new_tn = max(256, ((tn // 2) // 256) * 256)
            if new_tn == tn:
                break
            tn = new_tn
        while n_steps(b_blk, tn) < 6 and b_blk > 1:
            b_blk = max(1, b_blk // 2)
            while B % b_blk:
                b_blk -= 1

    return b_blk, tn, vmem_limit


def _make_vn_linear_kernel(b_blk):
    def kernel(w_ref, x_ref, o_ref):
        # w_ref: (C_out, C_in)       -- stationary across the whole grid
        # x_ref: (b_blk, C_in, tn)   -- batch block x spatial lane-tile
        # o_ref: (b_blk, C_out, tn)  -- lane-dense output tile
        w = w_ref[...]
        for b in range(b_blk):       # small static unrolled loop (b_blk <= 16)
            o_ref[b, :, :] = jnp.dot(
                w, x_ref[b, :, :], preferred_element_type=jnp.float32
            ).astype(o_ref.dtype)

    return kernel


def vn_linear(x, weight):
    """x: [B, C_in, *spatial], weight: [C_out, C_in]. Returns [B, C_out, *spatial]."""
    B, C_in = x.shape[0], x.shape[1]
    spatial = x.shape[2:]
    C_out = weight.shape[0]
    S = 1
    for d in spatial:
        S *= d

    weight = weight.astype(x.dtype)
    # Free reshape: channel axis stays in place, trailing dims flatten to lanes.
    x2 = x.reshape(B, C_in, S)

    b_blk, tn, vmem_limit = _pick_tiles(B, S, C_in, C_out, x.dtype)
    grid = (pl.cdiv(B, b_blk), pl.cdiv(S, tn))

    flops = 2 * B * S * C_in * C_out
    bytes_accessed = (
        x.dtype.itemsize * B * C_in * S
        + x.dtype.itemsize * B * C_out * S
        + weight.dtype.itemsize * C_out * C_in
    )

    out = pl.pallas_call(
        _make_vn_linear_kernel(b_blk),
        out_shape=jax.ShapeDtypeStruct((B, C_out, S), x.dtype),
        grid_spec=pltpu.PrefetchScalarGridSpec(
            num_scalar_prefetch=0,
            grid=grid,
            in_specs=[
                # Weight: natural [C_out, C_in] layout, constant index map
                # -> stays resident in VMEM across every grid step.
                pl.BlockSpec((C_out, C_in), lambda b, j: (0, 0)),
                # x tile: batch block, full channel dim, tn spatial lanes.
                pl.BlockSpec((b_blk, C_in, tn), lambda b, j: (b, 0, j)),
            ],
            out_specs=pl.BlockSpec((b_blk, C_out, tn), lambda b, j: (b, 0, j)),
        ),
        compiler_params=pltpu.CompilerParams(
            dimension_semantics=("parallel", "parallel"),
            vmem_limit_bytes=vmem_limit,
        ),
        cost_estimate=pl.CostEstimate(
            flops=flops, transcendentals=0, bytes_accessed=bytes_accessed
        ),
    )(weight, x2)

    # Free reshape back to [B, C_out, *spatial].
    return out.reshape((B, C_out) + spatial)


if __name__ == "__main__":
    key = jax.random.PRNGKey(0)
    kx, kw = jax.random.split(key)

    B, C_in, C_out, N = 2, 4, 8, 16
    x = jax.random.normal(kx, (B, C_in, 3, N), dtype=jnp.float32)

    # nn.Linear(in_channels, out_channels, bias=False) weight: [out, in],
    # Kaiming-uniform-like scale, deterministic from PRNGKey(0).
    bound = 1.0 / jnp.sqrt(jnp.float32(C_in))
    w = jax.random.uniform(kw, (C_out, C_in), jnp.float32, -bound, bound)

    y = jax.block_until_ready(vn_linear(x, w))

    # Pure-JAX reference of the PyTorch semantics:
    #   map_to_feat(x.transpose(1, -1)).transpose(1, -1)
    y_ref = jnp.einsum("oi,bicn->bocn", w, x)
    assert y.shape == (B, C_out, 3, N)
    assert jnp.allclose(y, y_ref, atol=1e-5, rtol=1e-5)

    print("KERNEL_OK")
</pallas_src>

<mosaic_0001>
module attributes {stable_mosaic.version = 11 : i64} {
  func.func @kernel(%arg0: i32, %arg1: i32, %arg2: memref<8x4xf32, #tpu.memory_space<vmem>>, %arg3: memref<2x4x48xf32, #tpu.memory_space<vmem>>, %arg4: memref<2x8x48xf32, #tpu.memory_space<vmem>>) attributes {dimension_semantics = [#tpu.dimension_semantics<parallel>, #tpu.dimension_semantics<parallel>], iteration_bounds = array<i64: 1, 1>, scalar_prefetch = 0 : i64, scratch_operands = 0 : i64, tpu.core_type = #tpu.core_type<tc>, window_params = [{pipeline_mode = #tpu.pipeline_mode<synchronous>, transform_indices = @transform_0, window_bounds = array<i64: 8, 4>}, {transform_indices = @transform_1, window_bounds = array<i64: 2, 4, 48>}, {transform_indices = @transform_2, window_bounds = array<i64: 2, 8, 48>}]} {
    %c0 = arith.constant 0 : index
    %c0_0 = arith.constant 0 : index
    %0 = vector.load %arg2[%c0, %c0_0] : memref<8x4xf32, #tpu.memory_space<vmem>>, vector<8x4xf32>
    %c0_1 = arith.constant 0 : index
    %c0_2 = arith.constant 0 : index
    %c0_3 = arith.constant 0 : index
    %1 = vector.load %arg3[%c0_1, %c0_2, %c0_3] : memref<2x4x48xf32, #tpu.memory_space<vmem>>, vector<1x4x48xf32>
    %2 = vector.shape_cast %1 : vector<1x4x48xf32> to vector<4x48xf32>
    %cst = arith.constant dense<0.000000e+00> : vector<8x48xf32>
    %3 = tpu.matmul %0, %2, %cst {dimension_numbers = #tpu.dot_dimension_numbers<[1], [0], [0], [1], [0, 0, 1, 1], [], []>} : vector<8x4xf32>, vector<4x48xf32>, vector<8x48xf32> -> vector<8x48xf32>
    %c0_4 = arith.constant 0 : index
    %c0_5 = arith.constant 0 : index
    %c0_6 = arith.constant 0 : index
    %4 = vector.load %arg4[%c0_4, %c0_5, %c0_6] : memref<2x8x48xf32, #tpu.memory_space<vmem>>, vector<1x8x48xf32>
    %5 = vector.shape_cast %4 : vector<1x8x48xf32> to vector<8x48xf32>
    %6 = vector.shape_cast %3 : vector<8x48xf32> to vector<1x8x48xf32>
    tpu.vector_store %arg4[%c0_4, %c0_5, %c0_6], %6 {strides = array<i32>} : memref<2x8x48xf32, #tpu.memory_space<vmem>>, vector<1x8x48xf32>,
    %c1 = arith.constant 1 : index
    %c0_7 = arith.constant 0 : index
    %c0_8 = arith.constant 0 : index
    %7 = vector.load %arg3[%c1, %c0_7, %c0_8] : memref<2x4x48xf32, #tpu.memory_space<vmem>>, vector<1x4x48xf32>
    %8 = vector.shape_cast %7 : vector<1x4x48xf32> to vector<4x48xf32>
    %cst_9 = arith.constant dense<0.000000e+00> : vector<8x48xf32>
    %9 = tpu.matmul %0, %8, %cst_9 {dimension_numbers = #tpu.dot_dimension_numbers<[1], [0], [0], [1], [0, 0, 1, 1], [], []>} : vector<8x4xf32>, vector<4x48xf32>, vector<8x48xf32> -> vector<8x48xf32>
    %c1_10 = arith.constant 1 : index
    %c0_11 = arith.constant 0 : index
    %c0_12 = arith.constant 0 : index
    %10 = vector.load %arg4[%c1_10, %c0_11, %c0_12] : memref<2x8x48xf32, #tpu.memory_space<vmem>>, vector<1x8x48xf32>
    %11 = vector.shape_cast %10 : vector<1x8x48xf32> to vector<8x48xf32>
    %12 = vector.shape_cast %9 : vector<8x48xf32> to vector<1x8x48xf32>
    tpu.vector_store %arg4[%c1_10, %c0_11, %c0_12], %12 {strides = array<i32>} : memref<2x8x48xf32, #tpu.memory_space<vmem>>, vector<1x8x48xf32>,
    return
  }
  func.func @transform_0(%arg0: i32, %arg1: i32) -> (i32, i32) {
    %c0_i32 = arith.constant 0 : i32
    %c0_i32_0 = arith.constant 0 : i32
    %c0_i32_1 = arith.constant 0 : i32
    return %c0_i32, %c0_i32_0 : i32, i32
  }
  func.func @transform_1(%arg0: i32, %arg1: i32) -> (i32, i32, i32) {
    %c0_i32 = arith.constant 0 : i32
    %c0_i32_0 = arith.constant 0 : i32
    return %arg0, %c0_i32, %arg1 : i32, i32, i32
  }
  func.func @transform_2(%arg0: i32, %arg1: i32) -> (i32, i32, i32) {
    %c0_i32 = arith.constant 0 : i32
    %c0_i32_0 = arith.constant 0 : i32
    return %arg0, %c0_i32, %arg1 : i32, i32, i32
  }
}

</mosaic_0001>

<llo_original>
// kernel: tpu_custom_call.1
$region0: #{tpu_custom_call.1}
  #allocation0 [shape = 'u32[]', space=smem, size = 0x4, offset = 0x4, fixed_abs, tag = 'smem constant byte address 0x4 - core index']
  #allocation1 [shape = 'u32[72,128]{1,0:T(1,128)}', space=vmem, size = 0x9000, scoped, tag = 'internal scratch']
  %s0 = inlined_call_operand.vmem [shape: f32[8,4], index: 0, kind: input, shape index: {}]
  %s1 = inlined_call_operand.vmem [shape: f32[2,4,48], index: 1, kind: input, shape index: {}]
  %s2 = inlined_call_operand.hbm [shape: f32[2,8,48], index: 2, kind: output, shape index: {}]
  %s3 = sld [smem:[#allocation0]]
  $region18: #{tpu_custom_call.1} parent=0
    _
  %s5 = ssub.s32 1, %s3
  %s6 = scalar_select 0, %s5, %s3
  $region1: #{tpu_custom_call.1} parent=0
    #allocation2 [shape = 'u8[8192]{0}', space=vmem, size = 0x2000, scoped, tag = 'output window, operand 0, single buffered']
    #allocation3 [shape = 's32[1]{0}', space=sflag, size = 0x4, scoped, tag = 'scoped memory for tpu_custom_call.1']
    %7 = vsyncpa [#allocation3], 0
    // Predicated region
    $region2: #{tpu_custom_call.1} parent=1 // pred_check
      _
    $region3: #{tpu_custom_call.1} parent=1 // pred_check_branch
      %9 = sbr.rel (0) target = $region5
    $region4: #{tpu_custom_call.1} parent=1 // pred_region
      _
    $region5: #{tpu_custom_call.1} parent=1 // pred_fallthru
      _
    // Predicated region
    $region6: #{tpu_custom_call.1} parent=1 // pred_check
      _
    $region7: #{tpu_custom_call.1} parent=1 // pred_check_branch
      %11 = sbr.rel (0) target = $region9
    $region8: #{tpu_custom_call.1} parent=1 // pred_region
      _
    $region9: #{tpu_custom_call.1} parent=1 // pred_fallthru
      _
    %v12 = vld [vmem:[%s0] sm:$0xff]
    %v13 = vld [vmem:[%s1] sm:$0xf]
    %vm14 = vcmask 31744
    %v16 = vsel %vm14, %v12, 0
    %vm18 = vcmask 1043456
    %v20 = vsel %vm18, %v13, 0
    %22 = vmatpush.msra.mxu0 0.0
    %23 = vmatpush.msra.mxu0 0.0
    %24 = vmatpush.msra.mxu0 0.0
    %25 = vmatpush.msra.mxu0 0.0
    %26 = vmatpush.msra.mxu0 0.0
    %27 = vmatpush.msra.mxu0 0.0
    %28 = vmatpush.msra.mxu0 0.0
    %29 = vmatpush.msra.mxu0 0.0
    %30 = vmatpush.msra.mxu0 0.0
    %31 = vmatpush.msra.mxu0 0.0
    %32 = vmatpush.msra.mxu0 0.0
    %33 = vmatpush.msra.mxu0 0.0
    %34 = vmatpush.msra.mxu0 0.0
    %35 = vmatpush.msra.mxu0 0.0
    %36 = vmatpush.msra.mxu0 0.0
    %37 = vmatpush.msra.mxu0 %v20
    %38 = vmatmul.f32.gmra.mxu0 %v16
    %v39 = vpop.f32.mrf.mxu0
    %v40 = vadd.f32 0.0, %v39
    %41 = vdwg.mxu0
    %vm42 = vcmask 392192
    %43 = vst.msk [vmem:[#allocation2] sm:$0xff] %vm42, %v40
    %s44 = scalar_lea.vmem %s1, 4
    %v45 = vld [vmem:[%s44] sm:$0xf]
    %v47 = vsel %vm18, %v45, 0
    %49 = vmatpush.msra.mxu0 0.0
    %50 = vmatpush.msra.mxu0 0.0
    %51 = vmatpush.msra.mxu0 0.0
    %52 = vmatpush.msra.mxu0 0.0
    %53 = vmatpush.msra.mxu0 0.0
    %54 = vmatpush.msra.mxu0 0.0
    %55 = vmatpush.msra.mxu0 0.0
    %56 = vmatpush.msra.mxu0 0.0
    %57 = vmatpush.msra.mxu0 0.0
    %58 = vmatpush.msra.mxu0 0.0
    %59 = vmatpush.msra.mxu0 0.0
    %60 = vmatpush.msra.mxu0 0.0
    %61 = vmatpush.msra.mxu0 0.0
    %62 = vmatpush.msra.mxu0 0.0
    %63 = vmatpush.msra.mxu0 0.0
    %64 = vmatpush.msra.mxu0 %v47
    %65 = vmatmul.f32.gmra.mxu0 %v16
    %v66 = vpop.f32.mrf.mxu0
    %v67 = vadd.f32 0.0, %v66
    %68 = vdwg.mxu0
    %s69 = scalar_lea.vmem [#allocation2], 8
    %70 = vst.msk [vmem:[%s69] sm:$0xff] %vm42, %v67
    // Predicated region
    $region10: #{tpu_custom_call.1} parent=1 // pred_check
      _
    $region11: #{tpu_custom_call.1} parent=1 // pred_check_branch
      %72 = sbr.rel (0) target = $region13
    $region12: #{tpu_custom_call.1} parent=1 // pred_region
      %74 = vsyncadd [#allocation3], 0
      %s75 = sshll.u32 [#allocation2], 4
      %s76 = int_to_ptr.vmem [resolvable:$true] %s75
      %s77 = sshll.u32 %s2, 4
      %s78 = int_to_ptr.hbm [resolvable:$true] %s77
      %83 = dma.vmem_to_hbm [thread:$0]  %s76, 256, %s78, [#allocation3], 128, 128, 8
    $region13: #{tpu_custom_call.1} parent=1 // pred_fallthru
      _
    // Predicated region
    $region14: #{tpu_custom_call.1} parent=1 // pred_check
      _
    $region15: #{tpu_custom_call.1} parent=1 // pred_check_branch
      %85 = sbr.rel (0) target = $region17
    $region16: #{tpu_custom_call.1} parent=1 // pred_region
      %87 = dma.done [#allocation3], 256
    $region17: #{tpu_custom_call.1} parent=1 // pred_fallthru
      _
    %88 = vsyncpa [#allocation3], 1

</llo_original>
